<compile_context>
chip_gen: v7x
topology: tpu7x:2x2x1
jax: 0.10.0
libtpu: 0.0.40
codegen_flags: <defaults>
</compile_context>

<pallas_src>
import functools

import jax
import jax.numpy as jnp
from jax.experimental import pallas as pl
from jax.experimental.pallas import tpu as pltpu


def _round_up(x, m):
    return ((x + m - 1) // m) * m


def _vmem_capacity_bytes():
    """Per-core VMEM capacity; conservative fallback if the query is unavailable."""
    try:
        info = pltpu.get_tpu_info()
        cap = getattr(info, "vmem_capacity_bytes", None)
        if cap:
            return int(cap)
    except Exception:
        pass
    return 64 * 1024 * 1024  # v7x per-TC capacity (smallest of the three generations)


def _choose_tile_b(b, d, itemsize, vmem_capacity):
    """Batch tile giving ~2-8 MiB per (lane-padded) input block, VMEM-budget bounded."""
    d_pad = _round_up(max(d, 1), 128)  # VMEM tiles are lane-padded to 128
    # 3 inputs x 2 pipeline buffers + f32 compute temporaries must fit comfortably.
    target = min(8 * 1024 * 1024, max(2 * 1024 * 1024, vmem_capacity // 24))
    tile = target // (d_pad * max(itemsize, 1))
    tile = max(8, (int(tile) // 8) * 8)          # sublane-aligned
    tile = min(tile, _round_up(b, 8))            # never bigger than the batch
    return max(tile, 8)


# ---------------------------------------------------------------------------
# Fast path: whole problem in one block (small B*D).
# ---------------------------------------------------------------------------
def _combined_loss_small_kernel(a_ref, p_ref, n_ref, loss_ref, l1_ref, l2_ref,
                                *, margin, weight, eps, inv_bd, inv_b):
    a = a_ref[...].astype(jnp.float32)
    p = p_ref[...].astype(jnp.float32)
    n = n_ref[...].astype(jnp.float32)

    diff_ap = p - a                 # reused: MSE, and (a - p + eps) = eps - diff_ap
    diff_an = a - n + eps

    loss1 = jnp.sum(diff_ap * diff_ap) * inv_bd

    ap_e = eps - diff_ap
    d_ap = jnp.sqrt(jnp.sum(ap_e * ap_e, axis=-1, keepdims=True))
    d_an = jnp.sqrt(jnp.sum(diff_an * diff_an, axis=-1, keepdims=True))
    loss2 = jnp.sum(jnp.maximum(d_ap - d_an + margin, 0.0)) * inv_b

    loss_ref[0, 0] = loss1 + weight * loss2
    l1_ref[0, 0] = loss1
    l2_ref[0, 0] = loss2


# ---------------------------------------------------------------------------
# Tiled path: (parallel chunk, batch tile) grid with VMEM vector accumulators.
# ---------------------------------------------------------------------------
def _combined_loss_tiled_kernel(a_ref, p_ref, n_ref, partial_ref,
                                acc_sq_ref, acc_h_ref,
                                *, margin, eps, total_b, tile_b, num_tiles, num_inner):
    j = pl.program_id(0)   # "parallel" chunk -> megacore split on v7x
    i = pl.program_id(1)   # "arbitrary" reduction axis within the chunk

    # ---- init this chunk's accumulators ----
    @pl.when(i == 0)
    def _():
        acc_sq_ref[...] = jnp.zeros_like(acc_sq_ref)
        acc_h_ref[...] = jnp.zeros_like(acc_h_ref)

    t = j * num_inner + i  # un-clamped global tile index (used only for masking)

    a = a_ref[...].astype(jnp.float32)
    p = p_ref[...].astype(jnp.float32)
    n = n_ref[...].astype(jnp.float32)

    # Row-validity mask: ragged last tile and fully-out-of-range (clamped) tiles.
    row = jax.lax.broadcasted_iota(jnp.int32, (tile_b, 1), 0) + t * tile_b
    valid = row < total_b                                     # (tile_b, 1) bool

    # jnp.where (not a 0/1 multiply) so garbage in the block tail cannot create 0*NaN.
    diff_ap = jnp.where(valid, p - a, 0.0)
    diff_an = jnp.where(valid, a - n + eps, 0.0)

    # MSE row partials -> VMEM vector accumulator (scalar collapse deferred to finalize).
    acc_sq_ref[...] += jnp.sum(diff_ap * diff_ap, axis=-1, keepdims=True)

    # Triplet hinge; PyTorch adds eps inside pairwise_distance: a - p + eps = eps - diff_ap.
    ap_e = eps - diff_ap
    d_ap = jnp.sqrt(jnp.sum(ap_e * ap_e, axis=-1, keepdims=True))
    d_an = jnp.sqrt(jnp.sum(diff_an * diff_an, axis=-1, keepdims=True))
    hinge = jnp.maximum(d_ap - d_an + margin, 0.0)
    acc_h_ref[...] += jnp.where(valid, hinge, 0.0)

    # ---- finalize: this chunk writes its two partial sums into its own output block ----
    @pl.when(i == num_inner - 1)
    def _():
        s_sq = jnp.sum(acc_sq_ref[...])
        s_h = jnp.sum(acc_h_ref[...])
        sub = jax.lax.broadcasted_iota(jnp.int32, (8, 128), 0)
        partial_ref[...] = jnp.where(sub == 0, s_sq, jnp.where(sub == 1, s_h, 0.0))


def combined_loss_l2(inputs, targets=None, *, margin=1.0, weight=1.0,
                     tile_b=None, force_tiled=False):
    """inputs: tuple/list (anchor, positives, negatives), each (B, D). Returns (loss, loss1, loss2)."""
    del targets  # unused by the PyTorch module's forward
    anchor, positives, negatives = inputs[0], inputs[1], inputs[2]
    B, D = anchor.shape
    eps = 1e-6
    itemsize = jnp.dtype(anchor.dtype).itemsize
    d_pad = _round_up(max(D, 1), 128)
    vmem_cap = _vmem_capacity_bytes()
    vmem_limit = int(min((vmem_cap * 3) // 4, 100 * 1024 * 1024))

    # ---- small-problem fast path: single block, no grid loop / accumulators ----
    f32_block_bytes = _round_up(B, 8) * d_pad * 4
    if not force_tiled and 3 * f32_block_bytes <= 6 * 1024 * 1024:
        kernel = functools.partial(
            _combined_loss_small_kernel,
            margin=float(margin), weight=float(weight), eps=eps,
            inv_bd=1.0 / float(B * D), inv_b=1.0 / float(B))
        out_shape = tuple(jax.ShapeDtypeStruct((1, 1), jnp.float32) for _ in range(3))
        in_spec = pl.BlockSpec((B, D), lambda i: (0, 0))
        out_spec = pl.BlockSpec(memory_space=pltpu.SMEM)
        loss, l1, l2 = pl.pallas_call(
            kernel,
            out_shape=out_shape,
            grid=(1,),
            in_specs=[in_spec] * 3,
            out_specs=(out_spec,) * 3,
            compiler_params=pltpu.CompilerParams(
                dimension_semantics=("arbitrary",)),
        )(anchor, positives, negatives)
        return loss[0, 0], l1[0, 0], l2[0, 0]

    # ---- batch-tiled path ----
    if tile_b is None:
        tile_b = _choose_tile_b(B, D, itemsize, vmem_cap)
    tile_b = max(8, (int(tile_b) // 8) * 8)

    num_tiles = pl.cdiv(B, tile_b)
    num_parallel = 2 if num_tiles >= 2 else 1      # 2-way megacore split on v7x
    num_inner = pl.cdiv(num_tiles, num_parallel)

    def in_index_map(j, i):
        t = j * num_inner + i
        # Clamp overflow tiles (odd tile counts) to valid memory; masked out in-kernel.
        return (jnp.minimum(t, num_tiles - 1), 0)

    block_bytes = tile_b * d_pad * itemsize
    if num_inner >= 4 and block_bytes < (1 << 20):
        # Small blocks: deepen input pipelining to hide exposed DMA latency.
        in_spec = pl.BlockSpec((tile_b, D), in_index_map, pipeline_mode=pl.Buffered(3))
    else:
        in_spec = pl.BlockSpec((tile_b, D), in_index_map)

    kernel = functools.partial(
        _combined_loss_tiled_kernel,
        margin=float(margin), eps=eps,
        total_b=B, tile_b=tile_b, num_tiles=num_tiles, num_inner=num_inner)

    partials = pl.pallas_call(
        kernel,
        out_shape=jax.ShapeDtypeStruct((num_parallel * 8, 128), jnp.float32),
        grid=(num_parallel, num_inner),
        in_specs=[in_spec] * 3,
        out_specs=pl.BlockSpec((8, 128), lambda j, i: (j, 0)),
        scratch_shapes=[pltpu.VMEM((tile_b, 1), jnp.float32),
                        pltpu.VMEM((tile_b, 1), jnp.float32)],
        compiler_params=pltpu.CompilerParams(
            dimension_semantics=("parallel", "arbitrary"),
            vmem_limit_bytes=vmem_limit),
    )(anchor, positives, negatives)

    # Combine the per-core partial sums and apply the TRUE means (tiny XLA epilogue).
    pm = partials.reshape(num_parallel, 8, 128)
    sum_sq = jnp.sum(pm[:, 0, 0])
    sum_h = jnp.sum(pm[:, 1, 0])
    loss1 = sum_sq / float(B * D)
    loss2 = sum_h / float(B)
    loss = loss1 + float(weight) * loss2
    return loss, loss1, loss2


def _reference(inputs, margin=1.0, weight=1.0, eps=1e-6):
    a, p, n = [x.astype(jnp.float32) for x in inputs]
    loss1 = jnp.mean((p - a) ** 2)
    d_ap = jnp.sqrt(jnp.sum((a - p + eps) ** 2, axis=-1))
    d_an = jnp.sqrt(jnp.sum((a - n + eps) ** 2, axis=-1))
    loss2 = jnp.mean(jnp.maximum(d_ap - d_an + margin, 0.0))
    return loss1 + weight * loss2, loss1, loss2


if __name__ == "__main__":
    key = jax.random.PRNGKey(0)
    ka, kp, kn = jax.random.split(key, 3)

    # Small shapes consistent with the module: (batch, embedding_dim) triplets.
    B, D = 8, 32
    anchor = jax.random.normal(ka, (B, D), dtype=jnp.float32)
    positives = anchor + 0.1 * jax.random.normal(kp, (B, D), dtype=jnp.float32)
    negatives = jax.random.normal(kn, (B, D), dtype=jnp.float32)

    out = combined_loss_l2((anchor, positives, negatives), None, margin=1.0, weight=1.0)
    jax.block_until_ready(out)
    ref = _reference((anchor, positives, negatives))
    assert all(bool(jnp.allclose(o, r, atol=1e-5, rtol=1e-4))
               for o, r in zip(out, ref)), (out, ref)

    # Tiled (grid) path: ragged last tile + clamped overflow tile + 2-way "parallel"
    # split (B=21, tile_b=8 -> 3 real tiles spread over a (2, 2) grid).
    B2 = 21
    a2 = jax.random.normal(ka, (B2, D), dtype=jnp.float32)
    p2 = a2 + 0.1 * jax.random.normal(kp, (B2, D), dtype=jnp.float32)
    n2 = jax.random.normal(kn, (B2, D), dtype=jnp.float32)
    out2 = combined_loss_l2((a2, p2, n2), None, tile_b=8, force_tiled=True)
    jax.block_until_ready(out2)
    ref2 = _reference((a2, p2, n2))
    assert all(bool(jnp.allclose(o, r, atol=1e-5, rtol=1e-4))
               for o, r in zip(out2, ref2)), (out2, ref2)

    # Tiled path with an evenly divisible batch (mask inactive).
    B3 = 32
    a3 = jax.random.normal(ka, (B3, D), dtype=jnp.float32)
    p3 = a3 + 0.1 * jax.random.normal(kp, (B3, D), dtype=jnp.float32)
    n3 = jax.random.normal(kn, (B3, D), dtype=jnp.float32)
    out3 = combined_loss_l2((a3, p3, n3), None, tile_b=8, force_tiled=True)
    jax.block_until_ready(out3)
    ref3 = _reference((a3, p3, n3))
    assert all(bool(jnp.allclose(o, r, atol=1e-5, rtol=1e-4))
               for o, r in zip(out3, ref3)), (out3, ref3)

    print("KERNEL_OK")
</pallas_src>

<mosaic_0001>
module attributes {stable_mosaic.version = 11 : i64} {
  func.func @_combined_loss_small_kernel(%arg0: i32, %arg1: memref<8x32xf32, #tpu.memory_space<vmem>>, %arg2: memref<8x32xf32, #tpu.memory_space<vmem>>, %arg3: memref<8x32xf32, #tpu.memory_space<vmem>>, %arg4: memref<1x1xf32, #tpu.memory_space<smem>>, %arg5: memref<1x1xf32, #tpu.memory_space<smem>>, %arg6: memref<1x1xf32, #tpu.memory_space<smem>>) attributes {dimension_semantics = [#tpu.dimension_semantics<arbitrary>], iteration_bounds = array<i64: 1>, scalar_prefetch = 0 : i64, scratch_operands = 0 : i64, tpu.core_type = #tpu.core_type<tc>, window_params = [{pipeline_mode = #tpu.pipeline_mode<synchronous>, transform_indices = @transform_0, window_bounds = array<i64: 8, 32>}, {pipeline_mode = #tpu.pipeline_mode<synchronous>, transform_indices = @transform_1, window_bounds = array<i64: 8, 32>}, {pipeline_mode = #tpu.pipeline_mode<synchronous>, transform_indices = @transform_2, window_bounds = array<i64: 8, 32>}, {transform_indices = @transform_3, window_bounds = array<i64: 1, 1>}, {transform_indices = @transform_4, window_bounds = array<i64: 1, 1>}, {transform_indices = @transform_5, window_bounds = array<i64: 1, 1>}]} {
    %c0 = arith.constant 0 : index
    %c0_0 = arith.constant 0 : index
    %0 = vector.load %arg1[%c0, %c0_0] : memref<8x32xf32, #tpu.memory_space<vmem>>, vector<8x32xf32>
    %c0_1 = arith.constant 0 : index
    %c0_2 = arith.constant 0 : index
    %1 = vector.load %arg2[%c0_1, %c0_2] : memref<8x32xf32, #tpu.memory_space<vmem>>, vector<8x32xf32>
    %c0_3 = arith.constant 0 : index
    %c0_4 = arith.constant 0 : index
    %2 = vector.load %arg3[%c0_3, %c0_4] : memref<8x32xf32, #tpu.memory_space<vmem>>, vector<8x32xf32>
    %3 = arith.subf %1, %0 : vector<8x32xf32>
    %4 = arith.subf %0, %2 : vector<8x32xf32>
    %cst = arith.constant 9.99999997E-7 : f32
    %5 = vector.broadcast %cst : f32 to vector<8x32xf32>
    %6 = arith.addf %4, %5 : vector<8x32xf32>
    %7 = arith.mulf %3, %3 : vector<8x32xf32>
    %8 = vector.shape_cast %7 : vector<8x32xf32> to vector<1x8x32xf32>
    %cst_5 = arith.constant dense<0.000000e+00> : vector<1xf32>
    %9 = vector.multi_reduction <add>, %8, %cst_5 [1, 2] : vector<1x8x32xf32> to vector<1xf32>
    %10 = vector.shape_cast %9 : vector<1xf32> to vector<1x1x1xf32>
    %11 = vector.extract %10[0, 0, 0] : f32 from vector<1x1x1xf32>
    %cst_6 = arith.constant 3.906250e-03 : f32
    %12 = arith.mulf %11, %cst_6 : f32
    %cst_7 = arith.constant 9.99999997E-7 : f32
    %13 = vector.broadcast %cst_7 : f32 to vector<8x32xf32>
    %14 = arith.subf %13, %3 : vector<8x32xf32>
    %15 = arith.mulf %14, %14 : vector<8x32xf32>
    %cst_8 = arith.constant dense<0.000000e+00> : vector<8xf32>
    %16 = vector.multi_reduction <add>, %15, %cst_8 [1] : vector<8x32xf32> to vector<8xf32>
    %17 = vector.shape_cast %16 : vector<8xf32> to vector<8x1xf32>
    %18 = math.sqrt %17 : vector<8x1xf32>
    %19 = arith.mulf %6, %6 : vector<8x32xf32>
    %cst_9 = arith.constant dense<0.000000e+00> : vector<8xf32>
    %20 = vector.multi_reduction <add>, %19, %cst_9 [1] : vector<8x32xf32> to vector<8xf32>
    %21 = vector.shape_cast %20 : vector<8xf32> to vector<8x1xf32>
    %22 = math.sqrt %21 : vector<8x1xf32>
    %23 = arith.subf %18, %22 : vector<8x1xf32>
    %cst_10 = arith.constant 1.000000e+00 : f32
    %24 = vector.broadcast %cst_10 : f32 to vector<8x1xf32>
    %25 = arith.addf %23, %24 : vector<8x1xf32>
    %cst_11 = arith.constant 0.000000e+00 : f32
    %26 = vector.broadcast %cst_11 : f32 to vector<8x1xf32>
    %27 = arith.maximumf %25, %26 : vector<8x1xf32>
    %28 = vector.shape_cast %27 : vector<8x1xf32> to vector<1x8x1xf32>
    %cst_12 = arith.constant dense<0.000000e+00> : vector<1xf32>
    %29 = vector.multi_reduction <add>, %28, %cst_12 [1, 2] : vector<1x8x1xf32> to vector<1xf32>
    %30 = vector.shape_cast %29 : vector<1xf32> to vector<1x1x1xf32>
    %31 = vector.extract %30[0, 0, 0] : f32 from vector<1x1x1xf32>
    %cst_13 = arith.constant 1.250000e-01 : f32
    %32 = arith.mulf %31, %cst_13 : f32
    %cst_14 = arith.constant 1.000000e+00 : f32
    %33 = arith.mulf %cst_14, %32 : f32
    %34 = arith.addf %12, %33 : f32
    %c0_15 = arith.constant 0 : index
    %c0_16 = arith.constant 0 : index
    %35 = memref.load %arg4[%c0_15, %c0_16] : memref<1x1xf32, #tpu.memory_space<smem>>
    memref.store %34, %arg4[%c0_15, %c0_16] : memref<1x1xf32, #tpu.memory_space<smem>>
    %c0_17 = arith.constant 0 : index
    %c0_18 = arith.constant 0 : index
    %36 = memref.load %arg5[%c0_17, %c0_18] : memref<1x1xf32, #tpu.memory_space<smem>>
    memref.store %12, %arg5[%c0_17, %c0_18] : memref<1x1xf32, #tpu.memory_space<smem>>
    %c0_19 = arith.constant 0 : index
    %c0_20 = arith.constant 0 : index
    %37 = memref.load %arg6[%c0_19, %c0_20] : memref<1x1xf32, #tpu.memory_space<smem>>
    memref.store %32, %arg6[%c0_19, %c0_20] : memref<1x1xf32, #tpu.memory_space<smem>>
    return
  }
  func.func @transform_0(%arg0: i32) -> (i32, i32) {
    %c0_i32 = arith.constant 0 : i32
    %c0_i32_0 = arith.constant 0 : i32
    %c0_i32_1 = arith.constant 0 : i32
    return %c0_i32, %c0_i32_0 : i32, i32
  }
  func.func @transform_1(%arg0: i32) -> (i32, i32) {
    %c0_i32 = arith.constant 0 : i32
    %c0_i32_0 = arith.constant 0 : i32
    %c0_i32_1 = arith.constant 0 : i32
    return %c0_i32, %c0_i32_0 : i32, i32
  }
  func.func @transform_2(%arg0: i32) -> (i32, i32) {
    %c0_i32 = arith.constant 0 : i32
    %c0_i32_0 = arith.constant 0 : i32
    %c0_i32_1 = arith.constant 0 : i32
    return %c0_i32, %c0_i32_0 : i32, i32
  }
  func.func @transform_3(%arg0: i32) -> (i32, i32) {
    %c0_i32 = arith.constant 0 : i32
    %c0_i32_0 = arith.constant 0 : i32
    %c0_i32_1 = arith.constant 0 : i32
    return %c0_i32, %c0_i32_0 : i32, i32
  }
  func.func @transform_4(%arg0: i32) -> (i32, i32) {
    %c0_i32 = arith.constant 0 : i32
    %c0_i32_0 = arith.constant 0 : i32
    %c0_i32_1 = arith.constant 0 : i32
    return %c0_i32, %c0_i32_0 : i32, i32
  }
  func.func @transform_5(%arg0: i32) -> (i32, i32) {
    %c0_i32 = arith.constant 0 : i32
    %c0_i32_0 = arith.constant 0 : i32
    %c0_i32_1 = arith.constant 0 : i32
    return %c0_i32, %c0_i32_0 : i32, i32
  }
}

</mosaic_0001>

<llo_original>
// kernel: tpu_custom_call.1
$region0: #{tpu_custom_call.1}
  #allocation0 [shape = 'u32[]', space=smem, size = 0x4, offset = 0x4, fixed_abs, tag = 'smem constant byte address 0x4 - core index']
  #allocation1 [shape = 'u32[144,128]{1,0:T(1,128)}', space=vmem, size = 0x12000, scoped, tag = 'internal scratch']
  %s0 = inlined_call_operand.hbm [shape: f32[8,32], index: 0, kind: input, shape index: {}]
  %s1 = inlined_call_operand.hbm [shape: f32[8,32], index: 1, kind: input, shape index: {}]
  %s2 = inlined_call_operand.hbm [shape: f32[8,32], index: 2, kind: input, shape index: {}]
  %s3 = inlined_call_operand.hbm [shape: f32[1,1], index: 3, kind: output, shape index: {0}]
  %s4 = inlined_call_operand.hbm [shape: f32[1,1], index: 4, kind: output, shape index: {1}]
  %s5 = inlined_call_operand.hbm [shape: f32[1,1], index: 5, kind: output, shape index: {2}]
  %6 = xla_tuple %s3, %s4, %s5
  %s7 = sld [smem:[#allocation0]]
  $region50: #{tpu_custom_call.1} parent=0
    _
  %s9 = ssub.s32 1, %s7
  %s10 = scalar_select 0, %s9, %s7
  $region1: #{tpu_custom_call.1} parent=0
    #allocation2 [shape = 'u8[4096]{0}', space=vmem, size = 0x1000, scoped, tag = 'input window, operand 0, single buffered']
    #allocation3 [shape = 's32[1]{0}', space=sflag, size = 0x4, scoped, tag = 'scoped memory for tpu_custom_call.1']
    #allocation4 [shape = 's32[1]{0}', space=sflag, size = 0x4, scoped, tag = 'scoped memory for tpu_custom_call.1']
    #allocation5 [shape = 'u8[4096]{0}', space=vmem, size = 0x1000, scoped, tag = 'input window, operand 1, single buffered']
    #allocation6 [shape = 's32[1]{0}', space=sflag, size = 0x4, scoped, tag = 'scoped memory for tpu_custom_call.1']
    #allocation7 [shape = 'u8[4096]{0}', space=vmem, size = 0x1000, scoped, tag = 'input window, operand 2, single buffered']
    #allocation8 [shape = 'u8[512]{0}', space=smem, size = 0x200, scoped, tag = 'output window, operand 0, single buffered']
    #allocation9 [shape = 'u8[512]{0}', space=smem, size = 0x200, scoped, tag = 'output window, operand 1, single buffered']
    #allocation10 [shape = 's32[1]{0}', space=sflag, size = 0x4, scoped, tag = 'scoped memory for tpu_custom_call.1']
    #allocation11 [shape = 'u8[512]{0}', space=smem, size = 0x200, scoped, tag = 'output window, operand 2, single buffered']
    %11 = vsyncpa [#allocation3], 0
    %12 = vsyncpa [#allocation6], 0
    %13 = vsyncpa [#allocation4], 0
    %14 = vsyncpa [#allocation10], 0
    // Predicated region
    $region2: #{tpu_custom_call.1} parent=1 // pred_check
      _
    $region3: #{tpu_custom_call.1} parent=1 // pred_check_branch
      %16 = sbr.rel (0) target = $region5
    $region4: #{tpu_custom_call.1} parent=1 // pred_region
      %s18 = ssub.s32 128, 128
      %19 = vsyncadd [#allocation3], %s18
      %s21 = sshll.u32 [#allocation2], 4
      %s22 = int_to_ptr.vmem [resolvable:$true] %s21
      %24 = dma.hbm_to_vmem [thread:$0]  %s0, 128, %s22, [#allocation3]
    $region5: #{tpu_custom_call.1} parent=1 // pred_fallthru
      _
    // Predicated region
    $region6: #{tpu_custom_call.1} parent=1 // pred_check
      _
    $region7: #{tpu_custom_call.1} parent=1 // pred_check_branch
      %26 = sbr.rel (0) target = $region9
    $region8: #{tpu_custom_call.1} parent=1 // pred_region
      %s28 = ssub.s32 128, 128
      %29 = vsyncadd [#allocation6], %s28
      %s31 = sshll.u32 [#allocation5], 4
      %s32 = int_to_ptr.vmem [resolvable:$true] %s31
      %34 = dma.hbm_to_vmem [thread:$0]  %s1, 128, %s32, [#allocation6]
    $region9: #{tpu_custom_call.1} parent=1 // pred_fallthru
      _
    // Predicated region
    $region10: #{tpu_custom_call.1} parent=1 // pred_check
      _
    $region11: #{tpu_custom_call.1} parent=1 // pred_check_branch
      %36 = sbr.rel (0) target = $region13
    $region12: #{tpu_custom_call.1} parent=1 // pred_region
      %s38 = ssub.s32 128, 128
      %39 = vsyncadd [#allocation6], %s38
      %s41 = sshll.u32 [#allocation7], 4
      %s42 = int_to_ptr.vmem [resolvable:$true] %s41
      %44 = dma.hbm_to_vmem [thread:$0]  %s2, 128, %s42, [#allocation6]
    $region13: #{tpu_custom_call.1} parent=1 // pred_fallthru
      _
    // Predicated region
    $region14: #{tpu_custom_call.1} parent=1 // pred_check
      _
    $region15: #{tpu_custom_call.1} parent=1 // pred_check_branch
      %46 = sbr.rel (0) target = $region17
    $region16: #{tpu_custom_call.1} parent=1 // pred_region
      %47 = dma.done [#allocation3], 128
    $region17: #{tpu_custom_call.1} parent=1 // pred_fallthru
      _
    // Predicated region
    $region18: #{tpu_custom_call.1} parent=1 // pred_check
      _
    $region19: #{tpu_custom_call.1} parent=1 // pred_check_branch
      %49 = sbr.rel (0) target = $region21
    $region20: #{tpu_custom_call.1} parent=1 // pred_region
      %50 = dma.done [#allocation6], 128
    $region21: #{tpu_custom_call.1} parent=1 // pred_fallthru
      _
    // Predicated region
    $region22: #{tpu_custom_call.1} parent=1 // pred_check
      _
    $region23: #{tpu_custom_call.1} parent=1 // pred_check_branch
      %52 = sbr.rel (0) target = $region25
    $region24: #{tpu_custom_call.1} parent=1 // pred_region
      %53 = dma.done [#allocation6], 128
    $region25: #{tpu_custom_call.1} parent=1 // pred_fallthru
      _
    %v54 = vld [vmem:[#allocation2] sm:$0xff]
    %v55 = vld [vmem:[#allocation5] sm:$0xff]
    %v56 = vld [vmem:[#allocation7] sm:$0xff]
    %v57 = vsub.f32 %v55, %v54
    %v58 = vsub.f32 %v54, %v56
    %v59 = vadd.f32 %v58, 1e-06
    %v60 = vmul.f32 %v57, %v57
    %vm61 = vcmask 261120
    %v62 = vsel %vm61, %v60, 0.0
    %63 = vadd.xlane.f32.xlu0 %v62
    %v64 = vpop.xlane.xlu0 %63
    %v65 = vrot.slane %v64, 4
    %v66 = vadd.f32 %v64, %v65
    %v67 = vrot.slane %v66, 2
    %v68 = vadd.f32 %v66, %v67
    %v69 = vrot.slane %v68, 1
    %v70 = vadd.f32 %v68, %v69
    %s71 = vtos %v70
    %s72 = smul.f32 %s71, 0.00390625
    %v73 = vsub.f32 1e-06, %v57
    %v74 = vmul.f32 %v73, %v73
    %v75 = vsel %vm61, %v74, 0.0
    %76 = vadd.xlane.f32.xlu0 %v75
    %v77 = vpop.xlane.xlu0 %76
    %v78 = vrsqrt.pop %v77
    %v79 = vmul.f32 %v77, %v78
    %vm80 = vcmp.eq.f32.partialorder %v77, inf
    %v81 = vsel %vm80, %v77, %v79
    %vm82 = vcmp.eq.f32.partialorder %v77, 0.0
    %v83 = vand.u32 %v77, 2147483648
    %v84 = vsel %vm82, %v83, %v81
    %v85 = vmul.f32 %v59, %v59
    %v86 = vsel %vm61, %v85, 0.0
    %87 = vadd.xlane.f32.xlu0 %v86
    %v88 = vpop.xlane.xlu0 %87
    %v89 = vrsqrt.pop %v88
    %v90 = vmul.f32 %v88, %v89
    %vm91 = vcmp.eq.f32.partialorder %v88, inf
    %v92 = vsel %vm91, %v88, %v90
    %vm93 = vcmp.eq.f32.partialorder %v88, 0.0
    %v94 = vand.u32 %v88, 2147483648
    %v95 = vsel %vm93, %v94, %v92
    %v96 = vsub.f32 %v84, %v95
    %v97 = vadd.f32 %v96, 1.0
    %v98 = vmax.f32 %v97, 0.0
    %vm99 = vcmask 7168
    %v100 = vsel %vm99, %v98, 0.0
    %101 = vadd.xlane.f32.xlu0 %v100
    %v102 = vpop.xlane.xlu0 %101
    %v103 = vrot.slane %v102, 4
    %v104 = vadd.f32 %v102, %v103
    %v105 = vrot.slane %v104, 2
    %v106 = vadd.f32 %v104, %v105
    %v107 = vrot.slane %v106, 1
    %v108 = vadd.f32 %v106, %v107
    %s109 = vtos %v108
    %s110 = smul.f32 %s109, 0.125
    %s111 = sadd.f32 %s72, %s110
    %s112 = scalar_lea.smem [#allocation8], 0
    %113 = sst [smem:[%s112]] %s111
    %s114 = scalar_lea.smem [#allocation9], 0
    %115 = sst [smem:[%s114]] %s72
    %s116 = scalar_lea.smem [#allocation11], 0
    %117 = sst [smem:[%s116]] %s110
    // Predicated region
    $region26: #{tpu_custom_call.1} parent=1 // pred_check
      _
    $region27: #{tpu_custom_call.1} parent=1 // pred_check_branch
      %119 = sbr.rel (0) target = $region29
    $region28: #{tpu_custom_call.1} parent=1 // pred_region
      %s121 = ssub.s32 16, 16
      %122 = vsyncadd [#allocation4], %s121
      %125 = dma.smem_to_hbm [#allocation8], 16, %s3, [#allocation4]
    $region29: #{tpu_custom_call.1} parent=1 // pred_fallthru
      _
    // Predicated region
    $region30: #{tpu_custom_call.1} parent=1 // pred_check
      _
    $region31: #{tpu_custom_call.1} parent=1 // pred_check_branch
      %127 = sbr.rel (0) target = $region33
    $region32: #{tpu_custom_call.1} parent=1 // pred_region
      %s129 = ssub.s32 16, 16
      %130 = vsyncadd [#allocation10], %s129
      %133 = dma.smem_to_hbm [#allocation9], 16, %s4, [#allocation10]
    $region33: #{tpu_custom_call.1} parent=1 // pred_fallthru
      _
    // Predicated region
    $region34: #{tpu_custom_call.1} parent=1 // pred_check
      _
    $region35: #{tpu_custom_call.1} parent=1 // pred_check_branch
      %135 = sbr.rel (0) target = $region37
    $region36: #{tpu_custom_call.1} parent=1 // pred_region
      %s137 = ssub.s32 16, 16
      %138 = vsyncadd [#allocation10], %s137
      %141 = dma.smem_to_hbm [#allocation11], 16, %s5, [#allocation10]
    $region37: #{tpu_custom_call.1} parent=1 // pred_fallthru
      _
    // Predicated region
    $region38: #{tpu_custom_call.1} parent=1 // pred_check
      _
    $region39: #{tpu_custom_call.1} parent=1 // pred_check_branch
      %143 = sbr.rel (0) target = $region41
    $region40: #{tpu_custom_call.1} parent=1 // pred_region
      %144 = dma.done [#allocation4], 16
    $region41: #{tpu_custom_call.1} parent=1 // pred_fallthru
      _
    // Predicated region
    $region42: #{tpu_custom_call.1} parent=1 // pred_check
      _
    $region43: #{tpu_custom_call.1} parent=1 // pred_check_branch
      %146 = sbr.rel (0) target = $region45
    $region44: #{tpu_custom_call.1} parent=1 // pred_region
      %147 = dma.done [#allocation10], 16
    $region45: #{tpu_custom_call.1} parent=1 // pred_fallthru
      _
    // Predicated region
    $region46: #{tpu_custom_call.1} parent=1 // pred_check
      _
    $region47: #{tpu_custom_call.1} parent=1 // pred_check_branch
      %149 = sbr.rel (0) target = $region49
    $region48: #{tpu_custom_call.1} parent=1 // pred_region
      %150 = dma.done [#allocation10], 16
    $region49: #{tpu_custom_call.1} parent=1 // pred_fallthru
      _
    %151 = sfence
    %152 = vsyncpa [#allocation3], 1
    %153 = vsyncpa [#allocation6], 1
    %154 = vsyncpa [#allocation4], 1
    %155 = vsyncpa [#allocation10], 1

</llo_original>
